<compile_context>
chip_gen: v6e
topology: v6e:2x2x1
jax: 0.10.0
libtpu: 0.0.40
codegen_flags: <defaults>
</compile_context>

<pallas_src>
import jax
import jax.numpy as jnp
from jax.experimental import pallas as pl
from jax.experimental.pallas import tpu as pltpu

AGENT_NUM = 5
_SUBLANE = 8
_VMEM_LIMIT = 32 * 1024 * 1024


def _round_up(x, m):
    return (x + m - 1) // m * m


def _medical_attention_kernel(mask_ref, q_ref, k_ref, v_ref, b1_ref, w2_ref,
                              o_ref):
    """One batch element per grid step.

      agent_token = (mask @ q) / T                     (1, D)      MXU
      s1          = agent_token @ k^T + b1             (A_pad, T)
      agent_attn  = softmax(s1, axis=-1)               (A_pad, T)
      agent_v     = agent_attn @ v                     (A_pad, D)  MXU
      x           = w2 @ agent_v                       (T, D)      MXU

    where w2 = softmax(b2): the q-side softmax's per-token score is constant
    across the agent axis, so it cancels in the max-subtract and the softmax
    collapses to softmax(b2) — q is not needed there at all.
    """
    mask = mask_ref[0]                       # (1, T)
    q = q_ref[0]                             # (T, D)
    k = k_ref[0]                             # (T, D)
    v = v_ref[0]                             # (T, D)
    b1 = b1_ref[...]                         # (A_pad, T) f32
    w2 = w2_ref[...]                         # (T, A_pad) f32

    t = q.shape[0]

    # Masked mean over the sequence: mask multiply + T-sum fused on the MXU.
    # Divides by the full T, matching the torch reference.
    agent_token = jnp.dot(mask, q, preferred_element_type=jnp.float32)
    agent_token = agent_token * jnp.float32(1.0 / t)                  # (1, D)

    # One shared score row (all agent rows are identical before the bias).
    s_row = jax.lax.dot_general(
        agent_token.astype(k.dtype), k, (((1,), (1,)), ((), ())),
        preferred_element_type=jnp.float32)                           # (1, T)
    s1 = s_row + b1                                                   # (A_pad, T)

    m = jnp.max(s1, axis=-1, keepdims=True)
    e = jnp.exp(s1 - m)
    # Exact reciprocal keeps the 1e-5 check; flip approx=True (EUP slot) if a
    # looser tolerance is acceptable.
    r = pl.reciprocal(jnp.sum(e, axis=-1, keepdims=True), approx=False)
    agent_attn = e * r                                                # (A_pad, T)

    agent_v = jnp.dot(agent_attn.astype(v.dtype), v,
                      preferred_element_type=jnp.float32)             # (A_pad, D)

    x = jnp.dot(w2, agent_v, preferred_element_type=jnp.float32)      # (T, D)
    o_ref[0] = x.astype(o_ref.dtype)


def medical_attention(qkv, medical_term_mask, b1, b2, *, agent_num=AGENT_NUM):
    q, k, v = qkv[0], qkv[1], qkv[2]
    B, T, D = q.shape
    a_pad = _round_up(agent_num, _SUBLANE)       # 5 -> 8 (sublane multiple)

    # Binary mask as (B, 1, T): folded into the agent-token MXU dot in-kernel;
    # no (B, T, D) masked-q intermediate is ever materialized.
    mask = (medical_term_mask != 0).astype(q.dtype).reshape(B, 1, T)

    # b1 zero-padded along the agent axis. Padded rows produce extra agent_v
    # rows that receive exactly-zero weight from w2's zero-padded columns.
    b1p = jnp.zeros((a_pad, T), jnp.float32).at[:agent_num, :].set(
        b1.astype(jnp.float32))

    # q-side softmax collapses to softmax(b2) (shift-invariance); it is
    # batch-independent so compute it once here and zero-pad the agent axis.
    w2 = jnp.zeros((T, a_pad), jnp.float32).at[:, :agent_num].set(
        jax.nn.softmax(b2.astype(jnp.float32), axis=-1))

    return pl.pallas_call(
        _medical_attention_kernel,
        out_shape=jax.ShapeDtypeStruct((B, T, D), q.dtype),
        grid_spec=pltpu.PrefetchScalarGridSpec(
            num_scalar_prefetch=0,
            grid=(B,),
            in_specs=[
                pl.BlockSpec((1, 1, T), lambda b: (b, 0, 0)),   # mask
                pl.BlockSpec((1, T, D), lambda b: (b, 0, 0)),   # q
                pl.BlockSpec((1, T, D), lambda b: (b, 0, 0)),   # k
                pl.BlockSpec((1, T, D), lambda b: (b, 0, 0)),   # v
                pl.BlockSpec((a_pad, T), lambda b: (0, 0)),     # b1 (padded)
                pl.BlockSpec((T, a_pad), lambda b: (0, 0)),     # softmax(b2)
            ],
            out_specs=pl.BlockSpec((1, T, D), lambda b: (b, 0, 0)),
        ),
        compiler_params=pltpu.CompilerParams(
            dimension_semantics=("parallel",),
            vmem_limit_bytes=_VMEM_LIMIT),
    )(mask, q, k, v, b1p, w2)


def _reference(q, k, v, mask, b1, b2, agent_num=AGENT_NUM):
    """Pure-JAX reference mirroring the PyTorch forward."""
    mq = q * (mask != 0).astype(q.dtype)[..., None]
    agent_token = jnp.mean(mq, axis=1, keepdims=True)                    # (B,1,D)
    agent_multi = jnp.broadcast_to(agent_token,
                                   (q.shape[0], agent_num, q.shape[2]))  # (B,A,D)
    agent_attn = jax.nn.softmax(
        jnp.einsum('bad,btd->bat', agent_multi, k) + b1, axis=-1)
    agent_v = jnp.einsum('bat,btd->bad', agent_attn, v)
    q_attn = jax.nn.softmax(
        jnp.einsum('btd,bad->bta', q, agent_multi) + b2, axis=-1)
    return jnp.einsum('bta,bad->btd', q_attn, agent_v)


if __name__ == "__main__":
    B, T, D = 2, 8, 32        # batch=2, TEXT_LEN=8, hidden=32
    A = AGENT_NUM             # agent_num=5

    key = jax.random.PRNGKey(0)
    kq, kk, kv, km, k1, k2 = jax.random.split(key, 6)
    q = jax.random.normal(kq, (B, T, D), jnp.float32)
    k = jax.random.normal(kk, (B, T, D), jnp.float32)
    v = jax.random.normal(kv, (B, T, D), jnp.float32)
    qkv = jnp.stack([q, k, v], axis=0)                      # (3, B, T, D)
    medical_term_mask = (jax.random.uniform(km, (B, T)) > 0.3).astype(jnp.float32)

    # Deterministic trunc_normal_(std=0.02) equivalents for b1 / b2.
    b1 = 0.02 * jax.random.truncated_normal(k1, -2.0, 2.0, (A, T), jnp.float32)
    b2 = 0.02 * jax.random.truncated_normal(k2, -2.0, 2.0, (T, A), jnp.float32)

    out = medical_attention(qkv, medical_term_mask, b1, b2, agent_num=A)
    out = jax.block_until_ready(out)

    ref = _reference(q, k, v, medical_term_mask, b1, b2, agent_num=A)
    assert out.shape == (B, T, D)
    assert jnp.allclose(out, ref, atol=1e-5, rtol=1e-5), "mismatch vs. reference"

    print("KERNEL_OK")
</pallas_src>

<mosaic_0001>
module attributes {stable_mosaic.version = 11 : i64} {
  func.func @_medical_attention_kernel(%arg0: i32, %arg1: memref<1x1x8xf32, #tpu.memory_space<vmem>>, %arg2: memref<1x8x32xf32, #tpu.memory_space<vmem>>, %arg3: memref<1x8x32xf32, #tpu.memory_space<vmem>>, %arg4: memref<1x8x32xf32, #tpu.memory_space<vmem>>, %arg5: memref<8x8xf32, #tpu.memory_space<vmem>>, %arg6: memref<8x8xf32, #tpu.memory_space<vmem>>, %arg7: memref<1x8x32xf32, #tpu.memory_space<vmem>>) attributes {dimension_semantics = [#tpu.dimension_semantics<parallel>], iteration_bounds = array<i64: 2>, scalar_prefetch = 0 : i64, scratch_operands = 0 : i64, tpu.core_type = #tpu.core_type<tc>, window_params = [{transform_indices = @transform_0, window_bounds = array<i64: 1, 1, 8>}, {transform_indices = @transform_1, window_bounds = array<i64: 1, 8, 32>}, {transform_indices = @transform_2, window_bounds = array<i64: 1, 8, 32>}, {transform_indices = @transform_3, window_bounds = array<i64: 1, 8, 32>}, {pipeline_mode = #tpu.pipeline_mode<synchronous>, transform_indices = @transform_4, window_bounds = array<i64: 8, 8>}, {pipeline_mode = #tpu.pipeline_mode<synchronous>, transform_indices = @transform_5, window_bounds = array<i64: 8, 8>}, {transform_indices = @transform_6, window_bounds = array<i64: 1, 8, 32>}]} {
    %c0 = arith.constant 0 : index
    %c0_0 = arith.constant 0 : index
    %c0_1 = arith.constant 0 : index
    %0 = vector.load %arg1[%c0, %c0_0, %c0_1] : memref<1x1x8xf32, #tpu.memory_space<vmem>>, vector<1x1x8xf32>
    %1 = vector.shape_cast %0 : vector<1x1x8xf32> to vector<1x8xf32>
    %c0_2 = arith.constant 0 : index
    %c0_3 = arith.constant 0 : index
    %c0_4 = arith.constant 0 : index
    %2 = vector.load %arg2[%c0_2, %c0_3, %c0_4] : memref<1x8x32xf32, #tpu.memory_space<vmem>>, vector<1x8x32xf32>
    %3 = vector.shape_cast %2 : vector<1x8x32xf32> to vector<8x32xf32>
    %c0_5 = arith.constant 0 : index
    %c0_6 = arith.constant 0 : index
    %c0_7 = arith.constant 0 : index
    %4 = vector.load %arg3[%c0_5, %c0_6, %c0_7] : memref<1x8x32xf32, #tpu.memory_space<vmem>>, vector<1x8x32xf32>
    %5 = vector.shape_cast %4 : vector<1x8x32xf32> to vector<8x32xf32>
    %c0_8 = arith.constant 0 : index
    %c0_9 = arith.constant 0 : index
    %c0_10 = arith.constant 0 : index
    %6 = vector.load %arg4[%c0_8, %c0_9, %c0_10] : memref<1x8x32xf32, #tpu.memory_space<vmem>>, vector<1x8x32xf32>
    %7 = vector.shape_cast %6 : vector<1x8x32xf32> to vector<8x32xf32>
    %c0_11 = arith.constant 0 : index
    %c0_12 = arith.constant 0 : index
    %8 = vector.load %arg5[%c0_11, %c0_12] : memref<8x8xf32, #tpu.memory_space<vmem>>, vector<8x8xf32>
    %c0_13 = arith.constant 0 : index
    %c0_14 = arith.constant 0 : index
    %9 = vector.load %arg6[%c0_13, %c0_14] : memref<8x8xf32, #tpu.memory_space<vmem>>, vector<8x8xf32>
    %cst = arith.constant dense<0.000000e+00> : vector<1x32xf32>
    %10 = tpu.matmul %1, %3, %cst {dimension_numbers = #tpu.dot_dimension_numbers<[1], [0], [0], [1], [0, 0, 1, 1], [], []>} : vector<1x8xf32>, vector<8x32xf32>, vector<1x32xf32> -> vector<1x32xf32>
    %cst_15 = arith.constant 1.250000e-01 : f32
    %11 = vector.broadcast %cst_15 : f32 to vector<1x32xf32>
    %12 = arith.mulf %10, %11 : vector<1x32xf32>
    %cst_16 = arith.constant dense<0.000000e+00> : vector<1x8xf32>
    %13 = tpu.matmul %12, %5, %cst_16 {dimension_numbers = #tpu.dot_dimension_numbers<[1], [1], [0], [0], [0, 0, 1, 0], [], []>} : vector<1x32xf32>, vector<8x32xf32>, vector<1x8xf32> -> vector<1x8xf32>
    %14 = vector.broadcast %13 : vector<1x8xf32> to vector<8x8xf32>
    %15 = arith.addf %14, %8 : vector<8x8xf32>
    %cst_17 = arith.constant dense<0xFF800000> : vector<8xf32>
    %16 = vector.multi_reduction <maximumf>, %15, %cst_17 [1] : vector<8x8xf32> to vector<8xf32>
    %17 = vector.shape_cast %16 : vector<8xf32> to vector<8x1xf32>
    %18 = vector.broadcast %17 : vector<8x1xf32> to vector<8x8xf32>
    %19 = arith.subf %15, %18 : vector<8x8xf32>
    %20 = math.exp %19 : vector<8x8xf32>
    %cst_18 = arith.constant dense<0.000000e+00> : vector<8xf32>
    %21 = vector.multi_reduction <add>, %20, %cst_18 [1] : vector<8x8xf32> to vector<8xf32>
    %22 = vector.shape_cast %21 : vector<8xf32> to vector<8x1xf32>
    %23 = tpu.reciprocal %22 : vector<8x1xf32> -> vector<8x1xf32>
    %24 = vector.broadcast %23 : vector<8x1xf32> to vector<8x8xf32>
    %25 = arith.mulf %20, %24 : vector<8x8xf32>
    %cst_19 = arith.constant dense<0.000000e+00> : vector<8x32xf32>
    %26 = tpu.matmul %25, %7, %cst_19 {dimension_numbers = #tpu.dot_dimension_numbers<[1], [0], [0], [1], [0, 0, 1, 1], [], []>} : vector<8x8xf32>, vector<8x32xf32>, vector<8x32xf32> -> vector<8x32xf32>
    %cst_20 = arith.constant dense<0.000000e+00> : vector<8x32xf32>
    %27 = tpu.matmul %9, %26, %cst_20 {dimension_numbers = #tpu.dot_dimension_numbers<[1], [0], [0], [1], [0, 0, 1, 1], [], []>} : vector<8x8xf32>, vector<8x32xf32>, vector<8x32xf32> -> vector<8x32xf32>
    %c0_21 = arith.constant 0 : index
    %c0_22 = arith.constant 0 : index
    %c0_23 = arith.constant 0 : index
    %28 = vector.load %arg7[%c0_21, %c0_22, %c0_23] : memref<1x8x32xf32, #tpu.memory_space<vmem>>, vector<1x8x32xf32>
    %29 = vector.shape_cast %28 : vector<1x8x32xf32> to vector<8x32xf32>
    %30 = vector.shape_cast %27 : vector<8x32xf32> to vector<1x8x32xf32>
    tpu.vector_store %arg7[%c0_21, %c0_22, %c0_23], %30 {strides = array<i32>} : memref<1x8x32xf32, #tpu.memory_space<vmem>>, vector<1x8x32xf32>,
    return
  }
  func.func @transform_0(%arg0: i32) -> (i32, i32, i32) {
    %c0_i32 = arith.constant 0 : i32
    %c0_i32_0 = arith.constant 0 : i32
    %c0_i32_1 = arith.constant 0 : i32
    return %arg0, %c0_i32, %c0_i32_0 : i32, i32, i32
  }
  func.func @transform_1(%arg0: i32) -> (i32, i32, i32) {
    %c0_i32 = arith.constant 0 : i32
    %c0_i32_0 = arith.constant 0 : i32
    %c0_i32_1 = arith.constant 0 : i32
    return %arg0, %c0_i32, %c0_i32_0 : i32, i32, i32
  }
  func.func @transform_2(%arg0: i32) -> (i32, i32, i32) {
    %c0_i32 = arith.constant 0 : i32
    %c0_i32_0 = arith.constant 0 : i32
    %c0_i32_1 = arith.constant 0 : i32
    return %arg0, %c0_i32, %c0_i32_0 : i32, i32, i32
  }
  func.func @transform_3(%arg0: i32) -> (i32, i32, i32) {
    %c0_i32 = arith.constant 0 : i32
    %c0_i32_0 = arith.constant 0 : i32
    %c0_i32_1 = arith.constant 0 : i32
    return %arg0, %c0_i32, %c0_i32_0 : i32, i32, i32
  }
  func.func @transform_4(%arg0: i32) -> (i32, i32) {
    %c0_i32 = arith.constant 0 : i32
    %c0_i32_0 = arith.constant 0 : i32
    %c0_i32_1 = arith.constant 0 : i32
    return %c0_i32, %c0_i32_0 : i32, i32
  }
  func.func @transform_5(%arg0: i32) -> (i32, i32) {
    %c0_i32 = arith.constant 0 : i32
    %c0_i32_0 = arith.constant 0 : i32
    %c0_i32_1 = arith.constant 0 : i32
    return %c0_i32, %c0_i32_0 : i32, i32
  }
  func.func @transform_6(%arg0: i32) -> (i32, i32, i32) {
    %c0_i32 = arith.constant 0 : i32
    %c0_i32_0 = arith.constant 0 : i32
    %c0_i32_1 = arith.constant 0 : i32
    return %arg0, %c0_i32, %c0_i32_0 : i32, i32, i32
  }
}

</mosaic_0001>

<llo_original>
// kernel: tpu_custom_call.1
$region0: #{tpu_custom_call.1}
  #allocation0 [shape = 'u32[]', space=smem, size = 0x4, offset = 0x4, fixed_abs, tag = 'smem constant byte address 0x4 - core index']
  #allocation1 [shape = 'u32[144,128]{1,0:T(1,128)}', space=vmem, size = 0x12000, scoped, tag = 'internal scratch']
  %s0 = inlined_call_operand.hbm [shape: f32[2,1,8], index: 0, kind: input, shape index: {}]
  %s1 = inlined_call_operand.hbm [shape: f32[2,8,32], index: 1, kind: input, shape index: {}]
  %s2 = inlined_call_operand.hbm [shape: f32[2,8,32], index: 2, kind: input, shape index: {}]
  %s3 = inlined_call_operand.hbm [shape: f32[2,8,32], index: 3, kind: input, shape index: {}]
  %s4 = inlined_call_operand.hbm [shape: f32[8,8], index: 4, kind: input, shape index: {}]
  %s5 = inlined_call_operand.vmem [shape: f32[8,8], index: 5, kind: input, shape index: {}]
  %s6 = inlined_call_operand.hbm [shape: f32[2,8,32], index: 6, kind: output, shape index: {}]
  %s7 = sld [smem:[#allocation0]]
  $region77: #{tpu_custom_call.1} parent=0
    _
  %s9 = ssub.s32 1, %s7
  %s10 = scalar_select 0, %s9, %s7
  $region1: #{tpu_custom_call.1} parent=0
    #allocation2 [shape = 'u8[1024]{0}', space=vmem, size = 0x400, scoped, tag = 'input window, operand 0']
    #allocation3 [shape = 's32[2]{0}', space=sflag, size = 0x8, scoped, tag = 'scoped memory for tpu_custom_call.1']
    #allocation4 [shape = 's32[2]{0}', space=sflag, size = 0x8, scoped, tag = 'scoped memory for tpu_custom_call.1']
    #allocation5 [shape = 'u8[8192]{0}', space=vmem, size = 0x2000, scoped, tag = 'input window, operand 1']
    #allocation6 [shape = 's32[2]{0}', space=sflag, size = 0x8, scoped, tag = 'scoped memory for tpu_custom_call.1']
    #allocation7 [shape = 'u8[8192]{0}', space=vmem, size = 0x2000, scoped, tag = 'input window, operand 2']
    #allocation8 [shape = 'u8[8192]{0}', space=vmem, size = 0x2000, scoped, tag = 'input window, operand 3']
    #allocation9 [shape = 's32[2]{0}', space=sflag, size = 0x8, scoped, tag = 'scoped memory for tpu_custom_call.1']
    #allocation10 [shape = 'u8[4096]{0}', space=vmem, size = 0x1000, scoped, tag = 'input window, operand 4, single buffered']
    #allocation11 [shape = 'u8[8192]{0}', space=vmem, size = 0x2000, scoped, tag = 'output window, operand 0']
    %11 = vsyncpa [#allocation3], 0
    %s12 = scalar_lea.sflag [#allocation3], 1
    %13 = vsyncpa %s12, 0
    %14 = vsyncpa [#allocation6], 0
    %s15 = scalar_lea.sflag [#allocation6], 1
    %16 = vsyncpa %s15, 0
    %17 = vsyncpa [#allocation9], 0
    %s18 = scalar_lea.sflag [#allocation9], 1
    %19 = vsyncpa %s18, 0
    %20 = vsyncpa [#allocation4], 0
    %s21 = scalar_lea.sflag [#allocation4], 1
    %22 = vsyncpa %s21, 0
    loop: start=0, step=1, limit=4
    $region2: #{tpu_custom_call.1} parent=1 // loop_pre_header
      _
    $region3: #{tpu_custom_call.1} parent=1 // loop_header
      %s24 = sphi 0, %s28
      %p25 = scmp.ge.s32.totalorder %s24, 4
      %s34 = sphi 0, %s36
      %s37 = sphi 0, %s34
      %s38 = sphi 0, %s37
      %s54 = sphi 0, %s38
      %s60 = sphi 0, %s62
      %s63 = sphi 0, %s60
      %s64 = sphi 0, %s63
      %s80 = sphi 0, %s64
      %s86 = sphi 0, %s88
      %s89 = sphi 0, %s86
      %s90 = sphi 0, %s89
      %s106 = sphi 0, %s90
      %s112 = sphi 0, %s114
      %s115 = sphi 0, %s112
      %s116 = sphi 0, %s115
      %s132 = sphi 0, %s116
      %s136 = sphi 0, %s136
      %s138 = sphi 0, %s136
      %s139 = sphi 0, %s138
      %s153 = sphi 0, %s139
      %s157 = sphi 0, %s157
      %s159 = sphi 0, %s157
      %s160 = sphi 0, %s159
      %s174 = sphi 0, %s160
      %s180 = sphi 0, %s182
      %s183 = sphi 0, %s180
      %s184 = sphi 0, %s183
      %s200 = sphi 0, %s184
    $region4: #{tpu_custom_call.1} parent=1 // loop_header_branch
      %27 = sbr.rel (%p25) target = $region8
    $region5: #{tpu_custom_call.1} parent=1 // loop_body
      %s29 = ssub.s32 %s24, 1
      %s30 = ssub.s32 %s24, 2
      %s31 = sadd.s32 %s24, 1
      %s32 = ssub.s32 %s24, %s31
      %p33 = scmp.eq.s32.totalorder %s32, 0
      %s35 = sadd.s32 %s34, 1
      %s36 = scalar_select %p33, %s34, %s35
      %p39 = pneg %p33
      %p40 = scmp.eq.s32.totalorder %s24, 1
      %p41 = por %p39, %p40
      %p42 = scmp.ne.s32.totalorder %s34, %s37
      %p43 = scmp.eq.s32.totalorder %s24, 0
      %p44 = por %p42, %p43
      %p45 = scmp.ne.s32.totalorder %s34, %s37
      %p46 = scmp.eq.s32.totalorder %s29, 1
      %p47 = por %p45, %p46
      %p48 = scmp.ne.s32.totalorder %s37, %s38
      %p49 = scmp.eq.s32.totalorder %s29, 0
      %p50 = por %p48, %p49
      %p51 = scmp.ne.s32.totalorder %s37, %s38
      %p52 = scmp.eq.s32.totalorder %s30, 1
      %p53 = por %p51, %p52
      %p55 = scmp.ne.s32.totalorder %s38, %s54
      %p56 = scmp.eq.s32.totalorder %s30, 0
      %p57 = por %p55, %p56
      %s58 = ssub.s32 %s24, %s31
      %p59 = scmp.eq.s32.totalorder %s58, 0
      %s61 = sadd.s32 %s60, 1
      %s62 = scalar_select %p59, %s60, %s61
      %p65 = pneg %p59
      %p66 = scmp.eq.s32.totalorder %s24, 1
      %p67 = por %p65, %p66
      %p68 = scmp.ne.s32.totalorder %s60, %s63
      %p69 = scmp.eq.s32.totalorder %s24, 0
      %p70 = por %p68, %p69
      %p71 = scmp.ne.s32.totalorder %s60, %s63
      %p72 = scmp.eq.s32.totalorder %s29, 1
      %p73 = por %p71, %p72
      %p74 = scmp.ne.s32.totalorder %s63, %s64
      %p75 = scmp.eq.s32.totalorder %s29, 0
      %p76 = por %p74, %p75
      %p77 = scmp.ne.s32.totalorder %s63, %s64
      %p78 = scmp.eq.s32.totalorder %s30, 1
      %p79 = por %p77, %p78
      %p81 = scmp.ne.s32.totalorder %s64, %s80
      %p82 = scmp.eq.s32.totalorder %s30, 0
      %p83 = por %p81, %p82
      %s84 = ssub.s32 %s24, %s31
      %p85 = scmp.eq.s32.totalorder %s84, 0
      %s87 = sadd.s32 %s86, 1
      %s88 = scalar_select %p85, %s86, %s87
      %p91 = pneg %p85
      %p92 = scmp.eq.s32.totalorder %s24, 1
      %p93 = por %p91, %p92
      %p94 = scmp.ne.s32.totalorder %s86, %s89
      %p95 = scmp.eq.s32.totalorder %s24, 0
      %p96 = por %p94, %p95
      %p97 = scmp.ne.s32.totalorder %s86, %s89
      %p98 = scmp.eq.s32.totalorder %s29, 1
      %p99 = por %p97, %p98
      %p100 = scmp.ne.s32.totalorder %s89, %s90
      %p101 = scmp.eq.s32.totalorder %s29, 0
      %p102 = por %p100, %p101
      %p103 = scmp.ne.s32.totalorder %s89, %s90
      %p104 = scmp.eq.s32.totalorder %s30, 1
      %p105 = por %p103, %p104
      %p107 = scmp.ne.s32.totalorder %s90, %s106
      %p108 = scmp.eq.s32.totalorder %s30, 0
      %p109 = por %p107, %p108
      %s110 = ssub.s32 %s24, %s31
      %p111 = scmp.eq.s32.totalorder %s110, 0
      %s113 = sadd.s32 %s112, 1
      %s114 = scalar_select %p111, %s112, %s113
      %p117 = pneg %p111
      %p118 = scmp.eq.s32.totalorder %s24, 1
      %p119 = por %p117, %p118
      %p120 = scmp.ne.s32.totalorder %s112, %s115
      %p121 = scmp.eq.s32.totalorder %s24, 0
      %p122 = por %p120, %p121
      %p123 = scmp.ne.s32.totalorder %s112, %s115
      %p124 = scmp.eq.s32.totalorder %s29, 1
      %p125 = por %p123, %p124
      %p126 = scmp.ne.s32.totalorder %s115, %s116
      %p127 = scmp.eq.s32.totalorder %s29, 0
      %p128 = por %p126, %p127
      %p129 = scmp.ne.s32.totalorder %s115, %s116
      %p130 = scmp.eq.s32.totalorder %s30, 1
      %p131 = por %p129, %p130
      %p133 = scmp.ne.s32.totalorder %s116, %s132
      %p134 = scmp.eq.s32.totalorder %s30, 0
      %p135 = por %p133, %p134
      %s137 = sadd.s32 %s136, 1
      %p140 = scmp.eq.s32.totalorder %s24, 1
      %p141 = scmp.ne.s32.totalorder %s136, %s138
      %p142 = scmp.eq.s32.totalorder %s24, 0
      %p143 = por %p141, %p142
      %p144 = scmp.ne.s32.totalorder %s136, %s138
      %p145 = scmp.eq.s32.totalorder %s29, 1
      %p146 = por %p144, %p145
      %p147 = scmp.ne.s32.totalorder %s138, %s139
      %p148 = scmp.eq.s32.totalorder %s29, 0
      %p149 = por %p147, %p148
      %p150 = scmp.ne.s32.totalorder %s138, %s139
      %p151 = scmp.eq.s32.totalorder %s30, 1
      %p152 = por %p150, %p151
      %p154 = scmp.ne.s32.totalorder %s139, %s153
      %p155 = scmp.eq.s32.totalorder %s30, 0
      %p156 = por %p154, %p155
      %s158 = sadd.s32 %s157, 1
      %p161 = scmp.eq.s32.totalorder %s24, 1
      %p162 = scmp.ne.s32.totalorder %s157, %s159
      %p163 = scmp.eq.s32.totalorder %s24, 0
      %p164 = por %p162, %p163
      %p165 = scmp.ne.s32.totalorder %s157, %s159
      %p166 = scmp.eq.s32.totalorder %s29, 1
      %p167 = por %p165, %p166
      %p168 = scmp.ne.s32.totalorder %s159, %s160
      %p169 = scmp.eq.s32.totalorder %s29, 0
      %p170 = por %p168, %p169
      %p171 = scmp.ne.s32.totalorder %s159, %s160
      %p172 = scmp.eq.s32.totalorder %s30, 1
      %p173 = por %p171, %p172
      %p175 = scmp.ne.s32.totalorder %s160, %s174
      %p176 = scmp.eq.s32.totalorder %s30, 0
      %p177 = por %p175, %p176
      %s178 = ssub.s32 %s24, %s31
      %p179 = scmp.eq.s32.totalorder %s178, 0
      %s181 = sadd.s32 %s180, 1
      %s182 = scalar_select %p179, %s180, %s181
      %p185 = pneg %p179
      %p186 = scmp.eq.s32.totalorder %s24, 1
      %p187 = por %p185, %p186
      %p188 = scmp.ne.s32.totalorder %s180, %s183
      %p189 = scmp.eq.s32.totalorder %s24, 0
      %p190 = por %p188, %p189
      %p191 = scmp.ne.s32.totalorder %s180, %s183
      %p192 = scmp.eq.s32.totalorder %s29, 1
      %p193 = por %p191, %p192
      %p194 = scmp.ne.s32.totalorder %s183, %s184
      %p195 = scmp.eq.s32.totalorder %s29, 0
      %p196 = por %p194, %p195
      %p197 = scmp.ne.s32.totalorder %s183, %s184
      %p198 = scmp.eq.s32.totalorder %s30, 1
      %p199 = por %p197, %p198
      %p201 = scmp.ne.s32.totalorder %s184, %s200
      %p202 = scmp.eq.s32.totalorder %s30, 0
      %p203 = por %p201, %p202
      %p204 = scmp.le.s32.totalorder 1, %s24
      %p205 = scmp.lt.s32.totalorder %s24, 3
      %p206 = pnand %p204, %p205
      %p207 = pneg %p206
      // Predicated region
      $region9: #{tpu_custom_call.1} parent=5 // pred_check
        _
      $region10: #{tpu_custom_call.1} parent=5 // pred_check_branch
        %209 = sbr.rel (%p206) target = $region12
      $region11: #{tpu_custom_call.1} parent=5 // pred_region
        %s210 = ssub.s32 %s24, 1
        // Predicated region
        $region13: #{tpu_custom_call.1} parent=11 // pred_check
          %p211 = pneg %p149
        $region14: #{tpu_custom_call.1} parent=11 // pred_check_branch
          %213 = sbr.rel (%p211) target = $region16
        $region15: #{tpu_custom_call.1} parent=11 // pred_region
          %s215 = ssub.s32 128, 128
          %216 = vsyncadd [#allocation9], %s215
          %s218 = sshll.u32 [#allocation10], 4
          %s219 = int_to_ptr.vmem [resolvable:$true] %s218
          %221 = dma.hbm_to_vmem [thread:$0]  %s4, 128, %s219, [#allocation9]
        $region16: #{tpu_custom_call.1} parent=11 // pred_fallthru
          _
        // Predicated region
        $region17: #{tpu_custom_call.1} parent=11 // pred_check
          %p222 = pneg %p170
        $region18: #{tpu_custom_call.1} parent=11 // pred_check_branch
          %224 = sbr.rel (%p222) target = $region20
        $region19: #{tpu_custom_call.1} parent=11 // pred_region
          _
        $region20: #{tpu_custom_call.1} parent=11 // pred_fallthru
          _
      $region12: #{tpu_custom_call.1} parent=5 // pred_fallthru
        _
      %p225 = scmp.lt.s32.totalorder %s24, 2
      // Predicated region
      $region21: #{tpu_custom_call.1} parent=5 // pred_check
        %p226 = pneg %p225
      $region22: #{tpu_custom_call.1} parent=5 // pred_check_branch
        %228 = sbr.rel (%p226) target = $region24
      $region23: #{tpu_custom_call.1} parent=5 // pred_region
        // Predicated region
        $region25: #{tpu_custom_call.1} parent=23 // pred_check
          %p229 = pneg %p44
        $region26: #{tpu_custom_call.1} parent=23 // pred_check_branch
          %231 = sbr.rel (%p229) target = $region28
        $region27: #{tpu_custom_call.1} parent=23 // pred_region
          %s232 = sand.u32 %s34, 1
          %s233 = scalar_lea.sflag [#allocation3], %s232
          %s234 = sand.u32 %s34, 1
          %s235 = scalar_lea.vmem [#allocation2], %s234
          %s237 = ssub.s32 16, 16
          %238 = vsyncadd %s233, %s237
          %s239 = smul.addr %s24, 16
          %s240 = scalar_lea.hbm %s0, %s239
          %s242 = sshll.u32 %s235, 4
          %s243 = int_to_ptr.vmem [resolvable:$true] %s242
          %245 = dma.hbm_to_vmem [thread:$0]  %s240, 16, %s243, %s233
        $region28: #{tpu_custom_call.1} parent=23 // pred_fallthru
          _
        // Predicated region
        $region29: #{tpu_custom_call.1} parent=23 // pred_check
          %p246 = pneg %p70
        $region30: #{tpu_custom_call.1} parent=23 // pred_check_branch
          %248 = sbr.rel (%p246) target = $region32
        $region31: #{tpu_custom_call.1} parent=23 // pred_region
          %s249 = sand.u32 %s24, 1
          %s250 = scalar_lea.sflag [#allocation6], %s249
          %s251 = sand.u32 %s60, 1
          %s252 = smul.addr %s251, 8
          %s253 = scalar_lea.vmem [#allocation5], %s252
          %s255 = ssub.s32 128, 128
          %256 = vsyncadd %s250, %s255
          %s257 = smul.addr %s24, 128
          %s258 = scalar_lea.hbm %s1, %s257
          %s260 = sshll.u32 %s253, 4
          %s261 = int_to_ptr.vmem [resolvable:$true] %s260
          %263 = dma.hbm_to_vmem [thread:$0]  %s258, 128, %s261, %s250
        $region32: #{tpu_custom_call.1} parent=23 // pred_fallthru
          _
        // Predicated region
        $region33: #{tpu_custom_call.1} parent=23 // pred_check
          %p264 = pneg %p96
        $region34: #{tpu_custom_call.1} parent=23 // pred_check_branch
          %266 = sbr.rel (%p264) target = $region36
        $region35: #{tpu_custom_call.1} parent=23 // pred_region
          %s267 = sand.u32 %s24, 1
          %s268 = scalar_lea.sflag [#allocation6], %s267
          %s269 = sand.u32 %s86, 1
          %s270 = smul.addr %s269, 8
          %s271 = scalar_lea.vmem [#allocation7], %s270
          %s273 = ssub.s32 128, 128
          %274 = vsyncadd %s268, %s273
          %s275 = smul.addr %s24, 128
          %s276 = scalar_lea.hbm %s2, %s275
          %s278 = sshll.u32 %s271, 4
          %s279 = int_to_ptr.vmem [resolvable:$true] %s278
          %281 = dma.hbm_to_vmem [thread:$0]  %s276, 128, %s279, %s268
        $region36: #{tpu_custom_call.1} parent=23 // pred_fallthru
          _
        // Predicated region
        $region37: #{tpu_custom_call.1} parent=23 // pred_check
          %p282 = pneg %p122
        $region38: #{tpu_custom_call.1} parent=23 // pred_check_branch
          %284 = sbr.rel (%p282) target = $region40
        $region39: #{tpu_custom_call.1} parent=23 // pred_region
          %s285 = sand.u32 %s24, 1
          %s286 = scalar_lea.sflag [#allocation9], %s285
          %s287 = sand.u32 %s112, 1
          %s288 = smul.addr %s287, 8
          %s289 = scalar_lea.vmem [#allocation8], %s288
          %s291 = ssub.s32 128, 128
          %292 = vsyncadd %s286, %s291
          %s293 = smul.addr %s24, 128
          %s294 = scalar_lea.hbm %s3, %s293
          %s296 = sshll.u32 %s289, 4
          %s297 = int_to_ptr.vmem [resolvable:$true] %s296
          %299 = dma.hbm_to_vmem [thread:$0]  %s294, 128, %s297, %s286
        $region40: #{tpu_custom_call.1} parent=23 // pred_fallthru
          _
      $region24: #{tpu_custom_call.1} parent=5 // pred_fallthru
        _
      %p300 = scmp.le.s32.totalorder 1, %s24
      %p301 = scmp.lt.s32.totalorder %s24, 3
      %p302 = pnand %p300, %p301
      %p303 = pneg %p302
      // Predicated region
      $region41: #{tpu_custom_call.1} parent=5 // pred_check
        _
      $region42: #{tpu_custom_call.1} parent=5 // pred_check_branch
        %305 = sbr.rel (%p302) target = $region44
      $region43: #{tpu_custom_call.1} parent=5 // pred_region
        %s306 = ssub.s32 %s24, 1
        %s307 = sand.u32 %s37, 1
        %s308 = scalar_lea.sflag [#allocation3], %s307
        %s309 = sand.u32 %s37, 1
        %s310 = scalar_lea.vmem [#allocation2], %s309
        // Predicated region
        $region45: #{tpu_custom_call.1} parent=43 // pred_check
          %p311 = pneg %p50
        $region46: #{tpu_custom_call.1} parent=43 // pred_check_branch
          %313 = sbr.rel (%p311) target = $region48
        $region47: #{tpu_custom_call.1} parent=43 // pred_region
          %314 = dma.done %s308, 16
        $region48: #{tpu_custom_call.1} parent=43 // pred_fallthru
          _
        %s315 = sand.u32 %s29, 1
        %s316 = scalar_lea.sflag [#allocation6], %s315
        %s317 = sand.u32 %s63, 1
        %s318 = smul.addr %s317, 8
        %s319 = scalar_lea.vmem [#allocation5], %s318
        // Predicated region
        $region49: #{tpu_custom_call.1} parent=43 // pred_check
          %p320 = pneg %p76
        $region50: #{tpu_custom_call.1} parent=43 // pred_check_branch
          %322 = sbr.rel (%p320) target = $region52
        $region51: #{tpu_custom_call.1} parent=43 // pred_region
          %323 = dma.done %s316, 128
        $region52: #{tpu_custom_call.1} parent=43 // pred_fallthru
          _
        %s324 = sand.u32 %s29, 1
        %s325 = scalar_lea.sflag [#allocation6], %s324
        %s326 = sand.u32 %s89, 1
        %s327 = smul.addr %s326, 8
        %s328 = scalar_lea.vmem [#allocation7], %s327
        // Predicated region
        $region53: #{tpu_custom_call.1} parent=43 // pred_check
          %p329 = pneg %p102
        $region54: #{tpu_custom_call.1} parent=43 // pred_check_branch
          %331 = sbr.rel (%p329) target = $region56
        $region55: #{tpu_custom_call.1} parent=43 // pred_region
          %332 = dma.done %s325, 128
        $region56: #{tpu_custom_call.1} parent=43 // pred_fallthru
          _
        %s333 = sand.u32 %s29, 1
        %s334 = scalar_lea.sflag [#allocation9], %s333
        %s335 = sand.u32 %s115, 1
        %s336 = smul.addr %s335, 8
        %s337 = scalar_lea.vmem [#allocation8], %s336
        // Predicated region
        $region57: #{tpu_custom_call.1} parent=43 // pred_check
          %p338 = pneg %p128
        $region58: #{tpu_custom_call.1} parent=43 // pred_check_branch
          %340 = sbr.rel (%p338) target = $region60
        $region59: #{tpu_custom_call.1} parent=43 // pred_region
          %341 = dma.done %s334, 128
        $region60: #{tpu_custom_call.1} parent=43 // pred_fallthru
          _
        // Predicated region
        $region61: #{tpu_custom_call.1} parent=43 // pred_check
          %p342 = pneg %p149
        $region62: #{tpu_custom_call.1} parent=43 // pred_check_branch
          %344 = sbr.rel (%p342) target = $region64
        $region63: #{tpu_custom_call.1} parent=43 // pred_region
          %345 = dma.done [#allocation9], 128
        $region64: #{tpu_custom_call.1} parent=43 // pred_fallthru
          _
        %s346 = sand.u32 %s37, 1
        %s347 = scalar_lea.sflag [#allocation3], %s346
        %s348 = sand.u32 %s37, 1
        %s349 = scalar_lea.vmem [#allocation2], %s348
        %p350 = pneg %p50
        %p351 = pneg %p47
        %s352 = sand.u32 %s29, 1
        %s353 = scalar_lea.sflag [#allocation6], %s352
        %s354 = sand.u32 %s63, 1
        %s355 = smul.addr %s354, 8
        %s356 = scalar_lea.vmem [#allocation5], %s355
        %p357 = pneg %p76
        %p358 = pneg %p73
        %s359 = sand.u32 %s29, 1
        %s360 = scalar_lea.sflag [#allocation6], %s359
        %s361 = sand.u32 %s89, 1
        %s362 = smul.addr %s361, 8
        %s363 = scalar_lea.vmem [#allocation7], %s362
        %p364 = pneg %p102
        %p365 = pneg %p99
        %s366 = sand.u32 %s29, 1
        %s367 = scalar_lea.sflag [#allocation9], %s366
        %s368 = sand.u32 %s115, 1
        %s369 = smul.addr %s368, 8
        %s370 = scalar_lea.vmem [#allocation8], %s369
        %p371 = pneg %p128
        %p372 = pneg %p125
        %p373 = pneg %p149
        %p374 = pneg %p146
        %p375 = pneg %p170
        %p376 = pneg %p167
        %p377 = pneg %p196
        %p378 = pneg %p193
        %s379 = sand.u32 %s183, 1
        %s380 = scalar_lea.sflag [#allocation4], %s379
        %s381 = sand.u32 %s183, 1
        %s382 = smul.addr %s381, 8
        %s383 = scalar_lea.vmem [#allocation11], %s382
        %v384 = vld [vmem:[%s310] sm:$0x1]
        %v385 = vld [vmem:[%s319] sm:$0xff]
        %v386 = vld [vmem:[%s328] sm:$0xff]
        %v387 = vld [vmem:[%s337] sm:$0xff]
        %v388 = vld [vmem:[#allocation10] sm:$0xff]
        %v389 = vld [vmem:[%s5] sm:$0xff]
        %vm390 = vcmask 64512
        %v392 = vsel %vm390, %v384, 0
        %394 = vmatprep.subr.mxu0 0.0
        %395 = vmatpush1.msra.mxu0 0.0
        %396 = vmatprep.subr.mxu0 0.0
        %397 = vmatpush1.msra.mxu0 0.0
        %398 = vmatprep.subr.mxu0 0.0
        %399 = vmatpush1.msra.mxu0 0.0
        %400 = vmatprep.subr.mxu0 0.0
        %401 = vmatpush1.msra.mxu0 0.0
        %402 = vmatprep.subr.mxu0 0.0
        %403 = vmatpush1.msra.mxu0 0.0
        %404 = vmatprep.subr.mxu0 0.0
        %405 = vmatpush1.msra.mxu0 0.0
        %406 = vmatprep.subr.mxu0 0.0
        %407 = vmatpush1.msra.mxu0 0.0
        %408 = vmatprep.subr.mxu0 0.0
        %409 = vmatpush1.msra.mxu0 0.0
        %410 = vmatprep.subr.mxu0 0.0
        %411 = vmatpush1.msra.mxu0 0.0
        %412 = vmatprep.subr.mxu0 0.0
        %413 = vmatpush1.msra.mxu0 0.0
        %414 = vmatprep.subr.mxu0 0.0
        %415 = vmatpush1.msra.mxu0 0.0
        %416 = vmatprep.subr.mxu0 0.0
        %417 = vmatpush1.msra.mxu0 0.0
        %418 = vmatprep.subr.mxu0 0.0
        %419 = vmatpush1.msra.mxu0 0.0
        %420 = vmatprep.subr.mxu0 0.0
        %421 = vmatpush1.msra.mxu0 0.0
        %422 = vmatprep.subr.mxu0 0.0
        %423 = vmatpush1.msra.mxu0 0.0
        %424 = vmatprep.subr.mxu0 0.0
        %425 = vmatpush1.msra.mxu0 %v385
        %426 = vmatprep.subr.mxu0 0.0
        %427 = vmatpush2.msra.mxu0 0.0
        %428 = vmatprep.subr.mxu0 0.0
        %429 = vmatpush2.msra.mxu0 0.0
        %430 = vmatprep.subr.mxu0 0.0
        %431 = vmatpush2.msra.mxu0 0.0
        %432 = vmatprep.subr.mxu0 0.0
        %433 = vmatpush2.msra.mxu0 0.0
        %434 = vmatprep.subr.mxu0 0.0
        %435 = vmatpush2.msra.mxu0 0.0
        %436 = vmatprep.subr.mxu0 0.0
        %437 = vmatpush2.msra.mxu0 0.0
        %438 = vmatprep.subr.mxu0 0.0
        %439 = vmatpush2.msra.mxu0 0.0
        %440 = vmatprep.subr.mxu0 0.0
        %441 = vmatpush2.msra.mxu0 0.0
        %442 = vmatprep.subr.mxu0 0.0
        %443 = vmatpush2.msra.mxu0 0.0
        %444 = vmatprep.subr.mxu0 0.0
        %445 = vmatpush2.msra.mxu0 0.0
        %446 = vmatprep.subr.mxu0 0.0
        %447 = vmatpush2.msra.mxu0 0.0
        %448 = vmatprep.subr.mxu0 0.0
        %449 = vmatpush2.msra.mxu0 0.0
        %450 = vmatprep.subr.mxu0 0.0
        %451 = vmatpush2.msra.mxu0 0.0
        %452 = vmatprep.subr.mxu0 0.0
        %453 = vmatpush2.msra.mxu0 0.0
        %454 = vmatprep.subr.mxu0 0.0
        %455 = vmatpush2.msra.mxu0 0.0
        %456 = vmatprep.subr.mxu0 0.0
        %457 = vmatpush2.msra.mxu0 0.0
        %458 = vmatprep.mubr.f32.mxu0 0.0
        %459 = vmatmul.mubr.f32.gmra.mxu0 %v392
        %v460 = vpop.f32.mrf.mxu0
        %v461 = vadd.f32 0.0, %v460
        %v462 = vpop.f32.mrf.mxu0
        %463 = vdwg.mxu0
        %v464 = vmul.f32 %v461, 0.125
        %vm465 = vcmask 261120
        %v467 = vsel %vm465, %v464, 0
        %v470 = vsel %vm465, %v386, 0
        %472 = vmatprep.subr.mxu0 0.0
        %473 = vmatpush1.xpose.msra.mxu0 0.0
        %474 = vmatprep.subr.mxu0 0.0
        %475 = vmatpush1.xpose.msra.mxu0 0.0
        %476 = vmatprep.subr.mxu0 0.0
        %477 = vmatpush1.xpose.msra.mxu0 0.0
        %478 = vmatprep.subr.mxu0 0.0
        %479 = vmatpush1.xpose.msra.mxu0 0.0
        %480 = vmatprep.subr.mxu0 0.0
        %481 = vmatpush1.xpose.msra.mxu0 0.0
        %482 = vmatprep.subr.mxu0 0.0
        %483 = vmatpush1.xpose.msra.mxu0 0.0
        %484 = vmatprep.subr.mxu0 0.0
        %485 = vmatpush1.xpose.msra.mxu0 0.0
        %486 = vmatprep.subr.mxu0 0.0
        %487 = vmatpush1.xpose.msra.mxu0 0.0
        %488 = vmatprep.subr.mxu0 0.0
        %489 = vmatpush1.xpose.msra.mxu0 0.0
        %490 = vmatprep.subr.mxu0 0.0
        %491 = vmatpush1.xpose.msra.mxu0 0.0
        %492 = vmatprep.subr.mxu0 0.0
        %493 = vmatpush1.xpose.msra.mxu0 0.0
        %494 = vmatprep.subr.mxu0 0.0
        %495 = vmatpush1.xpose.msra.mxu0 0.0
        %496 = vmatprep.subr.mxu0 0.0
        %497 = vmatpush1.xpose.msra.mxu0 0.0
        %498 = vmatprep.subr.mxu0 0.0
        %499 = vmatpush1.xpose.msra.mxu0 0.0
        %500 = vmatprep.subr.mxu0 0.0
        %501 = vmatpush1.xpose.msra.mxu0 0.0
        %502 = vmatprep.subr.mxu0 0.0
        %503 = vmatpush1.xpose.msra.mxu0 %v470
        %504 = vmatprep.subr.mxu0 0.0
        %505 = vmatpush2.xpose.msra.mxu0 0.0
        %506 = vmatprep.subr.mxu0 0.0
        %507 = vmatpush2.xpose.msra.mxu0 0.0
        %508 = vmatprep.subr.mxu0 0.0
        %509 = vmatpush2.xpose.msra.mxu0 0.0
        %510 = vmatprep.subr.mxu0 0.0
        %511 = vmatpush2.xpose.msra.mxu0 0.0
        %512 = vmatprep.subr.mxu0 0.0
        %513 = vmatpush2.xpose.msra.mxu0 0.0
        %514 = vmatprep.subr.mxu0 0.0
        %515 = vmatpush2.xpose.msra.mxu0 0.0
        %516 = vmatprep.subr.mxu0 0.0
        %517 = vmatpush2.xpose.msra.mxu0 0.0
        %518 = vmatprep.subr.mxu0 0.0
        %519 = vmatpush2.xpose.msra.mxu0 0.0
        %520 = vmatprep.subr.mxu0 0.0
        %521 = vmatpush2.xpose.msra.mxu0 0.0
        %522 = vmatprep.subr.mxu0 0.0
        %523 = vmatpush2.xpose.msra.mxu0 0.0
        %524 = vmatprep.subr.mxu0 0.0
        %525 = vmatpush2.xpose.msra.mxu0 0.0
        %526 = vmatprep.subr.mxu0 0.0
        %527 = vmatpush2.xpose.msra.mxu0 0.0
        %528 = vmatprep.subr.mxu0 0.0
        %529 = vmatpush2.xpose.msra.mxu0 0.0
        %530 = vmatprep.subr.mxu0 0.0
        %531 = vmatpush2.xpose.msra.mxu0 0.0
        %532 = vmatprep.subr.mxu0 0.0
        %533 = vmatpush2.xpose.msra.mxu0 0.0
        %534 = vmatprep.subr.mxu0 0.0
        %535 = vmatpush2.xpose.msra.mxu0 0.0
        %536 = vmatprep.mubr.f32.mxu0 0.0
        %537 = vmatmul.mubr.f32.gmra.mxu0 %v467
        %v538 = vpop.f32.mrf.mxu0
        %v539 = vadd.f32 0.0, %v538
        %v540 = vpop.f32.mrf.mxu0
        %541 = vdwg.mxu0
        %v542 = vlaneseq
        %v543 = vshrl.u32 %v542, 7
        %v544 = vsub.s32 0, %v543
        %v545 = vrot.slane %v539, %v544
        %v546 = vadd.f32 %v545, %v388
        %v547 = vsel %vm390, %v546, -inf
        %548 = vmax.xlane.f32.xlu0 %v547
        %v549 = vpop.xlane.xlu0 %548
        %v550 = vsub.f32 %v546, %v549
        %v551 = vmul.f32 %v550, 1.442695
        %v552 = vpow.pop %v551
        %v553 = vsel %vm390, %v552, 0.0
        %554 = vadd.xlane.f32.xlu0 %v553
        %v555 = vpop.xlane.xlu0 %554
        %v556 = vrcp.pop %v555
        %v557 = vmul.f32 %v552, %v556
        %v559 = vsel %vm390, %v557, 0
        %561 = vmatprep.subr.mxu0 0.0
        %562 = vmatpush1.msra.mxu0 0.0
        %563 = vmatprep.subr.mxu0 0.0
        %564 = vmatpush1.msra.mxu0 0.0
        %565 = vmatprep.subr.mxu0 0.0
        %566 = vmatpush1.msra.mxu0 0.0
        %567 = vmatprep.subr.mxu0 0.0
        %568 = vmatpush1.msra.mxu0 0.0
        %569 = vmatprep.subr.mxu0 0.0
        %570 = vmatpush1.msra.mxu0 0.0
        %571 = vmatprep.subr.mxu0 0.0
        %572 = vmatpush1.msra.mxu0 0.0
        %573 = vmatprep.subr.mxu0 0.0
        %574 = vmatpush1.msra.mxu0 0.0
        %575 = vmatprep.subr.mxu0 0.0
        %576 = vmatpush1.msra.mxu0 0.0
        %577 = vmatprep.subr.mxu0 0.0
        %578 = vmatpush1.msra.mxu0 0.0
        %579 = vmatprep.subr.mxu0 0.0
        %580 = vmatpush1.msra.mxu0 0.0
        %581 = vmatprep.subr.mxu0 0.0
        %582 = vmatpush1.msra.mxu0 0.0
        %583 = vmatprep.subr.mxu0 0.0
        %584 = vmatpush1.msra.mxu0 0.0
        %585 = vmatprep.subr.mxu0 0.0
        %586 = vmatpush1.msra.mxu0 0.0
        %587 = vmatprep.subr.mxu0 0.0
        %588 = vmatpush1.msra.mxu0 0.0
        %589 = vmatprep.subr.mxu0 0.0
        %590 = vmatpush1.msra.mxu0 0.0
        %591 = vmatprep.subr.mxu0 0.0
        %592 = vmatpush1.msra.mxu0 %v387
        %593 = vmatprep.subr.mxu0 0.0
        %594 = vmatpush2.msra.mxu0 0.0
        %595 = vmatprep.subr.mxu0 0.0
        %596 = vmatpush2.msra.mxu0 0.0
        %597 = vmatprep.subr.mxu0 0.0
        %598 = vmatpush2.msra.mxu0 0.0
        %599 = vmatprep.subr.mxu0 0.0
        %600 = vmatpush2.msra.mxu0 0.0
        %601 = vmatprep.subr.mxu0 0.0
        %602 = vmatpush2.msra.mxu0 0.0
        %603 = vmatprep.subr.mxu0 0.0
        %604 = vmatpush2.msra.mxu0 0.0
        %605 = vmatprep.subr.mxu0 0.0
        %606 = vmatpush2.msra.mxu0 0.0
        %607 = vmatprep.subr.mxu0 0.0
        %608 = vmatpush2.msra.mxu0 0.0
        %609 = vmatprep.subr.mxu0 0.0
        %610 = vmatpush2.msra.mxu0 0.0
        %611 = vmatprep.subr.mxu0 0.0
        %612 = vmatpush2.msra.mxu0 0.0
        %613 = vmatprep.subr.mxu0 0.0
        %614 = vmatpush2.msra.mxu0 0.0
        %615 = vmatprep.subr.mxu0 0.0
        %616 = vmatpush2.msra.mxu0 0.0
        %617 = vmatprep.subr.mxu0 0.0
        %618 = vmatpush2.msra.mxu0 0.0
        %619 = vmatprep.subr.mxu0 0.0
        %620 = vmatpush2.msra.mxu0 0.0
        %621 = vmatprep.subr.mxu0 0.0
        %622 = vmatpush2.msra.mxu0 0.0
        %623 = vmatprep.subr.mxu0 0.0
        %624 = vmatpush2.msra.mxu0 0.0
        %625 = vmatprep.mubr.f32.mxu0 0.0
        %626 = vmatmul.mubr.f32.gmra.mxu0 %v559
        %v627 = vpop.f32.mrf.mxu0
        %v628 = vadd.f32 0.0, %v627
        %v629 = vpop.f32.mrf.mxu0
        %630 = vdwg.mxu0
        %v632 = vsel %vm390, %v389, 0
        %634 = vmatprep.subr.mxu0 0.0
        %635 = vmatpush1.msra.mxu0 0.0
        %636 = vmatprep.subr.mxu0 0.0
        %637 = vmatpush1.msra.mxu0 0.0
        %638 = vmatprep.subr.mxu0 0.0
        %639 = vmatpush1.msra.mxu0 0.0
        %640 = vmatprep.subr.mxu0 0.0
        %641 = vmatpush1.msra.mxu0 0.0
        %642 = vmatprep.subr.mxu0 0.0
        %643 = vmatpush1.msra.mxu0 0.0
        %644 = vmatprep.subr.mxu0 0.0
        %645 = vmatpush1.msra.mxu0 0.0
        %646 = vmatprep.subr.mxu0 0.0
        %647 = vmatpush1.msra.mxu0 0.0
        %648 = vmatprep.subr.mxu0 0.0
        %649 = vmatpush1.msra.mxu0 0.0
        %650 = vmatprep.subr.mxu0 0.0
        %651 = vmatpush1.msra.mxu0 0.0
        %652 = vmatprep.subr.mxu0 0.0
        %653 = vmatpush1.msra.mxu0 0.0
        %654 = vmatprep.subr.mxu0 0.0
        %655 = vmatpush1.msra.mxu0 0.0
        %656 = vmatprep.subr.mxu0 0.0
        %657 = vmatpush1.msra.mxu0 0.0
        %658 = vmatprep.subr.mxu0 0.0
        %659 = vmatpush1.msra.mxu0 0.0
        %660 = vmatprep.subr.mxu0 0.0
        %661 = vmatpush1.msra.mxu0 0.0
        %662 = vmatprep.subr.mxu0 0.0
        %663 = vmatpush1.msra.mxu0 0.0
        %664 = vmatprep.subr.mxu0 0.0
        %665 = vmatpush1.msra.mxu0 %v628
        %666 = vmatprep.subr.mxu0 0.0
        %667 = vmatpush2.msra.mxu0 0.0
        %668 = vmatprep.subr.mxu0 0.0
        %669 = vmatpush2.msra.mxu0 0.0
        %670 = vmatprep.subr.mxu0 0.0
        %671 = vmatpush2.msra.mxu0 0.0
        %672 = vmatprep.subr.mxu0 0.0
        %673 = vmatpush2.msra.mxu0 0.0
        %674 = vmatprep.subr.mxu0 0.0
        %675 = vmatpush2.msra.mxu0 0.0
        %676 = vmatprep.subr.mxu0 0.0
        %677 = vmatpush2.msra.mxu0 0.0
        %678 = vmatprep.subr.mxu0 0.0
        %679 = vmatpush2.msra.mxu0 0.0
        %680 = vmatprep.subr.mxu0 0.0
        %681 = vmatpush2.msra.mxu0 0.0
        %682 = vmatprep.subr.mxu0 0.0
        %683 = vmatpush2.msra.mxu0 0.0
        %684 = vmatprep.subr.mxu0 0.0
        %685 = vmatpush2.msra.mxu0 0.0
        %686 = vmatprep.subr.mxu0 0.0
        %687 = vmatpush2.msra.mxu0 0.0
        %688 = vmatprep.subr.mxu0 0.0
        %689 = vmatpush2.msra.mxu0 0.0
        %690 = vmatprep.subr.mxu0 0.0
        %691 = vmatpush2.msra.mxu0 0.0
        %692 = vmatprep.subr.mxu0 0.0
        %693 = vmatpush2.msra.mxu0 0.0
        %694 = vmatprep.subr.mxu0 0.0
        %695 = vmatpush2.msra.mxu0 0.0
        %696 = vmatprep.subr.mxu0 0.0
        %697 = vmatpush2.msra.mxu0 0.0
        %698 = vmatprep.mubr.f32.mxu0 0.0
        %699 = vmatmul.mubr.f32.gmra.mxu0 %v632
        %v700 = vpop.f32.mrf.mxu0
        %v701 = vadd.f32 0.0, %v700
        %v702 = vpop.f32.mrf.mxu0
        %703 = vdwg.mxu0
        %704 = vst.msk [vmem:[%s383] sm:$0xff] %vm465, %v701
        %s705 = sand.u32 %s183, 1
        %s706 = scalar_lea.sflag [#allocation4], %s705
        %s707 = sand.u32 %s183, 1
        %s708 = smul.addr %s707, 8
        %s709 = scalar_lea.vmem [#allocation11], %s708
        // Predicated region
        $region65: #{tpu_custom_call.1} parent=43 // pred_check
          %p710 = pneg %p193
        $region66: #{tpu_custom_call.1} parent=43 // pred_check_branch
          %712 = sbr.rel (%p710) target = $region68
        $region67: #{tpu_custom_call.1} parent=43 // pred_region
          %s714 = ssub.s32 128, 128
          %715 = vsyncadd %s706, %s714
          %s716 = smul.addr %s29, 128
          %s717 = scalar_lea.hbm %s6, %s716
          %s719 = sshll.u32 %s709, 4
          %s720 = int_to_ptr.vmem [resolvable:$true] %s719
          %722 = dma.vmem_to_hbm [thread:$0]  %s720, 128, %s717, %s706
        $region68: #{tpu_custom_call.1} parent=43 // pred_fallthru
          _
      $region44: #{tpu_custom_call.1} parent=5 // pred_fallthru
        _
      %p723 = scmp.le.s32.totalorder 2, %s24
      // Predicated region
      $region69: #{tpu_custom_call.1} parent=5 // pred_check
        %p724 = pneg %p723
      $region70: #{tpu_custom_call.1} parent=5 // pred_check_branch
        %726 = sbr.rel (%p724) target = $region72
      $region71: #{tpu_custom_call.1} parent=5 // pred_region
        %s727 = ssub.s32 %s24, 2
        // Predicated region
        $region73: #{tpu_custom_call.1} parent=71 // pred_check
          %p728 = pneg %p199
        $region74: #{tpu_custom_call.1} parent=71 // pred_check_branch
          %730 = sbr.rel (%p728) target = $region76
        $region75: #{tpu_custom_call.1} parent=71 // pred_region
          %s731 = sand.u32 %s184, 1
          %s732 = scalar_lea.sflag [#allocation4], %s731
          %s733 = sand.u32 %s184, 1
          %s734 = smul.addr %s733, 8
          %s735 = scalar_lea.vmem [#allocation11], %s734
          %736 = dma.done %s732, 128
        $region76: #{tpu_custom_call.1} parent=71 // pred_fallthru
          _
      $region72: #{tpu_custom_call.1} parent=5 // pred_fallthru
        _
    $region6: #{tpu_custom_call.1} parent=1 // loop_footer
      %s28 = sadd.s32 1, %s24
    $region7: #{tpu_custom_call.1} parent=1 // loop_footer_branch
      %23 = sbr.rel target = $region3
    $region8: #{tpu_custom_call.1} parent=1 // loop_exit
      _
    %737 = vsyncpa [#allocation3], 1
    %s738 = scalar_lea.sflag [#allocation3], 1
    %739 = vsyncpa %s738, 1
    %740 = vsyncpa [#allocation6], 1
    %s741 = scalar_lea.sflag [#allocation6], 1
    %742 = vsyncpa %s741, 1
    %743 = vsyncpa [#allocation9], 1
    %s744 = scalar_lea.sflag [#allocation9], 1
    %745 = vsyncpa %s744, 1
    %746 = vsyncpa [#allocation4], 1
    %s747 = scalar_lea.sflag [#allocation4], 1
    %748 = vsyncpa %s747, 1

</llo_original>
